<compile_context>
chip_gen: v6e
topology: v6e:2x2x1
jax: 0.10.0
libtpu: 0.0.40
codegen_flags: <defaults>
</compile_context>

<pallas_src>
import numpy as np
import jax
import jax.numpy as jnp
from jax.experimental import pallas as pl
from jax.experimental.pallas import tpu as pltpu

_NEG_PAD = -1e30  # bias for padded output lanes; exp() underflows to exactly 0


def _categorical_kernel(x_ref, wT_ref, b_ref, logits_ref, logprobs_ref, probs_ref):
    # x: (TB, K), wT: (K, Npad) pre-transposed in the wrapper, b: (1, Npad).
    # Padded lanes carry bias = -1e30 so they never affect the row max / sum.
    logits = jnp.dot(x_ref[...], wT_ref[...],
                     preferred_element_type=jnp.float32) + b_ref[...]

    m = jnp.max(logits, axis=-1, keepdims=True)          # stable log-softmax
    shifted = logits - m
    e = jnp.exp(shifted)                                  # EUP
    log_z = jnp.log(jnp.sum(e, axis=-1, keepdims=True))
    log_probs = shifted - log_z

    logits_ref[...] = logits
    logprobs_ref[...] = log_probs
    probs_ref[...] = jnp.exp(log_probs)                   # == softmax, no divide


def _round_up(v, m):
    return ((v + m - 1) // m) * m


def categorical_forward(x, weight, bias, *, tile_b=512, compute_dtype=None,
                        vmem_budget_bytes=32 * 1024 * 1024):
    """Categorical head. Returns (logits, log_probs, probs), each (B, num_outputs) f32.

    x: (B, num_inputs) float32
    weight: (num_outputs, num_inputs)  (PyTorch nn.Linear convention)
    bias: (num_outputs,)
    compute_dtype: e.g. jnp.bfloat16 to halve x/W HBM traffic (f32 accumulate).
    """
    B, num_inputs = x.shape
    num_outputs, k2 = weight.shape
    assert k2 == num_inputs, "weight must be (num_outputs, num_inputs)"

    in_dtype = jnp.dtype(compute_dtype) if compute_dtype is not None else jnp.dtype(x.dtype)

    # Lane-dense outputs: pad class axis to a multiple of 128.
    n_pad = _round_up(max(num_outputs, 1), 128)

    # Pre-transpose + pad W once (K, Npad): MXU consumes it directly, no in-kernel w.T.
    wT = jnp.zeros((num_inputs, n_pad), dtype=in_dtype)
    wT = wT.at[:, :num_outputs].set(weight.T.astype(in_dtype))
    # Padded lanes get a hugely negative bias -> exp underflows to 0 in the softmax.
    b_pad = jnp.full((1, n_pad), _NEG_PAD, dtype=jnp.float32)
    b_pad = b_pad.at[0, :num_outputs].set(bias.astype(jnp.float32))

    # Effective batch tile: multiple of 8 sublanes, no larger than the (rounded)
    # batch, shrunk until the double-buffered per-step footprint fits the budget.
    in_item = jnp.dtype(in_dtype).itemsize
    tb = max(8, min(_round_up(tile_b, 8), _round_up(B, 8)))

    def footprint(t):
        x_bytes = 2 * t * num_inputs * in_item           # x tile, double-buffered
        w_bytes = 2 * num_inputs * n_pad * in_item        # resident W (2 bufs)
        b_bytes = 2 * 8 * n_pad * 4                       # bias (sublane-padded)
        o_bytes = 3 * 2 * t * n_pad * 4                   # three f32 outputs, 2 bufs
        return x_bytes + w_bytes + b_bytes + o_bytes

    while tb > 8 and footprint(tb) > vmem_budget_bytes:
        tb = max(8, _round_up(tb // 2, 8))

    b_padded = _round_up(B, tb)
    x_in = x.astype(in_dtype)
    if b_padded != B:
        x_in = jnp.pad(x_in, ((0, b_padded - B), (0, 0)))

    grid = (b_padded // tb,)
    out_block = pl.BlockSpec((tb, n_pad), lambda i: (i, 0))
    out_shapes = tuple(
        jax.ShapeDtypeStruct((b_padded, n_pad), jnp.float32) for _ in range(3))

    vmem_limit = int(min(max(footprint(tb) + (4 << 20), 16 << 20), 48 << 20))

    logits, log_probs, probs = pl.pallas_call(
        _categorical_kernel,
        out_shape=out_shapes,
        grid_spec=pltpu.PrefetchScalarGridSpec(
            num_scalar_prefetch=0,
            grid=grid,
            in_specs=[
                pl.BlockSpec((tb, num_inputs), lambda i: (i, 0)),     # x tile
                pl.BlockSpec((num_inputs, n_pad), lambda i: (0, 0)),  # W^T (resident)
                pl.BlockSpec((1, n_pad), lambda i: (0, 0)),           # bias
            ],
            out_specs=[out_block, out_block, out_block],
        ),
        compiler_params=pltpu.CompilerParams(
            dimension_semantics=("parallel",),
            vmem_limit_bytes=vmem_limit,
        ),
    )(x_in, wT, b_pad)

    return (logits[:B, :num_outputs],
            log_probs[:B, :num_outputs],
            probs[:B, :num_outputs])


def orthogonal_init(key, rows, cols, gain=0.01, dtype=jnp.float32):
    """Deterministic equivalent of torch.nn.init.orthogonal_ (gain scaled)."""
    flat = jax.random.normal(key, (max(rows, cols), min(rows, cols)), dtype=jnp.float32)
    q, r = jnp.linalg.qr(flat)
    q = q * jnp.sign(jnp.diagonal(r))   # sign fix, as in the PyTorch impl
    if rows < cols:
        q = q.T
    return (gain * q[:rows, :cols]).astype(dtype)


if __name__ == "__main__":
    key = jax.random.PRNGKey(0)
    k_x, k_w, k_x2 = jax.random.split(key, 3)

    batch, num_inputs, num_outputs = 8, 32, 16
    x = jax.random.normal(k_x, (batch, num_inputs), dtype=jnp.float32)
    weight = orthogonal_init(k_w, num_outputs, num_inputs, gain=0.01)
    bias = jnp.zeros((num_outputs,), dtype=jnp.float32)

    def ref(xv, wv, bv):
        lg = xv @ wv.T + bv
        lp = lg - jax.scipy.special.logsumexp(lg, axis=-1, keepdims=True)
        return lg, lp, jax.nn.softmax(lg, axis=-1)

    # Check 1: basic small batch.
    logits, log_probs, probs = categorical_forward(x, weight, bias)
    jax.block_until_ready((logits, log_probs, probs))
    r_lg, r_lp, r_p = ref(x, weight, bias)
    np.testing.assert_allclose(np.asarray(logits), np.asarray(r_lg), rtol=1e-5, atol=1e-5)
    np.testing.assert_allclose(np.asarray(log_probs), np.asarray(r_lp), rtol=1e-5, atol=1e-5)
    np.testing.assert_allclose(np.asarray(probs), np.asarray(r_p), rtol=1e-5, atol=1e-5)

    # Check 2: batch not divisible by the tile -> exercises padding + multi-step grid.
    batch2 = 50
    x2 = jax.random.normal(k_x2, (batch2, num_inputs), dtype=jnp.float32)
    logits2, log_probs2, probs2 = categorical_forward(x2, weight, bias, tile_b=16)
    jax.block_until_ready((logits2, log_probs2, probs2))
    r_lg2, r_lp2, r_p2 = ref(x2, weight, bias)
    np.testing.assert_allclose(np.asarray(logits2), np.asarray(r_lg2), rtol=1e-5, atol=1e-5)
    np.testing.assert_allclose(np.asarray(log_probs2), np.asarray(r_lp2), rtol=1e-5, atol=1e-5)
    np.testing.assert_allclose(np.asarray(probs2), np.asarray(r_p2), rtol=1e-5, atol=1e-5)

    print("KERNEL_OK")
</pallas_src>

<mosaic_0001>
module attributes {stable_mosaic.version = 11 : i64} {
  func.func @_categorical_kernel(%arg0: i32, %arg1: memref<8x32xf32, #tpu.memory_space<vmem>>, %arg2: memref<32x128xf32, #tpu.memory_space<vmem>>, %arg3: memref<1x128xf32, #tpu.memory_space<vmem>>, %arg4: memref<8x128xf32, #tpu.memory_space<vmem>>, %arg5: memref<8x128xf32, #tpu.memory_space<vmem>>, %arg6: memref<8x128xf32, #tpu.memory_space<vmem>>) attributes {dimension_semantics = [#tpu.dimension_semantics<parallel>], iteration_bounds = array<i64: 1>, scalar_prefetch = 0 : i64, scratch_operands = 0 : i64, tpu.core_type = #tpu.core_type<tc>, window_params = [{transform_indices = @transform_0, window_bounds = array<i64: 8, 32>}, {pipeline_mode = #tpu.pipeline_mode<synchronous>, transform_indices = @transform_1, window_bounds = array<i64: 32, 128>}, {pipeline_mode = #tpu.pipeline_mode<synchronous>, transform_indices = @transform_2, window_bounds = array<i64: 1, 128>}, {transform_indices = @transform_3, window_bounds = array<i64: 8, 128>}, {transform_indices = @transform_4, window_bounds = array<i64: 8, 128>}, {transform_indices = @transform_5, window_bounds = array<i64: 8, 128>}]} {
    %c0 = arith.constant 0 : index
    %c0_0 = arith.constant 0 : index
    %0 = vector.load %arg1[%c0, %c0_0] : memref<8x32xf32, #tpu.memory_space<vmem>>, vector<8x32xf32>
    %c0_1 = arith.constant 0 : index
    %c0_2 = arith.constant 0 : index
    %1 = vector.load %arg2[%c0_1, %c0_2] : memref<32x128xf32, #tpu.memory_space<vmem>>, vector<32x128xf32>
    %cst = arith.constant dense<0.000000e+00> : vector<8x128xf32>
    %2 = tpu.matmul %0, %1, %cst {dimension_numbers = #tpu.dot_dimension_numbers<[1], [0], [0], [1], [0, 0, 1, 1], [], []>} : vector<8x32xf32>, vector<32x128xf32>, vector<8x128xf32> -> vector<8x128xf32>
    %c0_3 = arith.constant 0 : index
    %c0_4 = arith.constant 0 : index
    %3 = vector.load %arg3[%c0_3, %c0_4] : memref<1x128xf32, #tpu.memory_space<vmem>>, vector<1x128xf32>
    %4 = vector.broadcast %3 : vector<1x128xf32> to vector<8x128xf32>
    %5 = arith.addf %2, %4 : vector<8x128xf32>
    %cst_5 = arith.constant dense<0xFF800000> : vector<8xf32>
    %6 = vector.multi_reduction <maximumf>, %5, %cst_5 [1] : vector<8x128xf32> to vector<8xf32>
    %7 = vector.shape_cast %6 : vector<8xf32> to vector<8x1xf32>
    %8 = vector.broadcast %7 : vector<8x1xf32> to vector<8x128xf32>
    %9 = arith.subf %5, %8 : vector<8x128xf32>
    %10 = math.exp %9 : vector<8x128xf32>
    %cst_6 = arith.constant dense<0.000000e+00> : vector<8xf32>
    %11 = vector.multi_reduction <add>, %10, %cst_6 [1] : vector<8x128xf32> to vector<8xf32>
    %12 = vector.shape_cast %11 : vector<8xf32> to vector<8x1xf32>
    %13 = math.log %12 : vector<8x1xf32>
    %14 = vector.broadcast %13 : vector<8x1xf32> to vector<8x128xf32>
    %15 = arith.subf %9, %14 : vector<8x128xf32>
    %c0_7 = arith.constant 0 : index
    %c0_8 = arith.constant 0 : index
    %16 = vector.load %arg4[%c0_7, %c0_8] : memref<8x128xf32, #tpu.memory_space<vmem>>, vector<8x128xf32>
    tpu.vector_store %arg4[%c0_7, %c0_8], %5 {strides = array<i32>} : memref<8x128xf32, #tpu.memory_space<vmem>>, vector<8x128xf32>,
    %c0_9 = arith.constant 0 : index
    %c0_10 = arith.constant 0 : index
    %17 = vector.load %arg5[%c0_9, %c0_10] : memref<8x128xf32, #tpu.memory_space<vmem>>, vector<8x128xf32>
    tpu.vector_store %arg5[%c0_9, %c0_10], %15 {strides = array<i32>} : memref<8x128xf32, #tpu.memory_space<vmem>>, vector<8x128xf32>,
    %18 = math.exp %15 : vector<8x128xf32>
    %c0_11 = arith.constant 0 : index
    %c0_12 = arith.constant 0 : index
    %19 = vector.load %arg6[%c0_11, %c0_12] : memref<8x128xf32, #tpu.memory_space<vmem>>, vector<8x128xf32>
    tpu.vector_store %arg6[%c0_11, %c0_12], %18 {strides = array<i32>} : memref<8x128xf32, #tpu.memory_space<vmem>>, vector<8x128xf32>,
    return
  }
  func.func @transform_0(%arg0: i32) -> (i32, i32) {
    %c0_i32 = arith.constant 0 : i32
    %c0_i32_0 = arith.constant 0 : i32
    return %arg0, %c0_i32 : i32, i32
  }
  func.func @transform_1(%arg0: i32) -> (i32, i32) {
    %c0_i32 = arith.constant 0 : i32
    %c0_i32_0 = arith.constant 0 : i32
    %c0_i32_1 = arith.constant 0 : i32
    return %c0_i32, %c0_i32_0 : i32, i32
  }
  func.func @transform_2(%arg0: i32) -> (i32, i32) {
    %c0_i32 = arith.constant 0 : i32
    %c0_i32_0 = arith.constant 0 : i32
    %c0_i32_1 = arith.constant 0 : i32
    return %c0_i32, %c0_i32_0 : i32, i32
  }
  func.func @transform_3(%arg0: i32) -> (i32, i32) {
    %c0_i32 = arith.constant 0 : i32
    %c0_i32_0 = arith.constant 0 : i32
    return %arg0, %c0_i32 : i32, i32
  }
  func.func @transform_4(%arg0: i32) -> (i32, i32) {
    %c0_i32 = arith.constant 0 : i32
    %c0_i32_0 = arith.constant 0 : i32
    return %arg0, %c0_i32 : i32, i32
  }
  func.func @transform_5(%arg0: i32) -> (i32, i32) {
    %c0_i32 = arith.constant 0 : i32
    %c0_i32_0 = arith.constant 0 : i32
    return %arg0, %c0_i32 : i32, i32
  }
}

</mosaic_0001>

<llo_original>
// kernel: tpu_custom_call.1
$region0: #{tpu_custom_call.1}
  #allocation0 [shape = 'u32[]', space=smem, size = 0x4, offset = 0x4, fixed_abs, tag = 'smem constant byte address 0x4 - core index']
  #allocation1 [shape = 'u32[144,128]{1,0:T(1,128)}', space=vmem, size = 0x12000, scoped, tag = 'internal scratch']
  %s0 = inlined_call_operand.hbm [shape: f32[8,32], index: 0, kind: input, shape index: {}]
  %s1 = inlined_call_operand.hbm [shape: f32[32,128], index: 1, kind: input, shape index: {}]
  %s2 = inlined_call_operand.vmem [shape: f32[1,128], index: 2, kind: input, shape index: {}]
  %s3 = inlined_call_operand.hbm [shape: f32[8,128], index: 3, kind: output, shape index: {0}]
  %s4 = inlined_call_operand.hbm [shape: f32[8,128], index: 4, kind: output, shape index: {1}]
  %s5 = inlined_call_operand.hbm [shape: f32[8,128], index: 5, kind: output, shape index: {2}]
  %6 = xla_tuple %s3, %s4, %s5
  %s7 = sld [smem:[#allocation0]]
  $region46: #{tpu_custom_call.1} parent=0
    _
  %s9 = ssub.s32 1, %s7
  %s10 = scalar_select 0, %s9, %s7
  $region1: #{tpu_custom_call.1} parent=0
    #allocation2 [shape = 'u8[4096]{0}', space=vmem, size = 0x1000, scoped, tag = 'input window, operand 0, single buffered']
    #allocation3 [shape = 's32[1]{0}', space=sflag, size = 0x4, scoped, tag = 'scoped memory for tpu_custom_call.1']
    #allocation4 [shape = 's32[1]{0}', space=sflag, size = 0x4, scoped, tag = 'scoped memory for tpu_custom_call.1']
    #allocation5 [shape = 'u8[16384]{0}', space=vmem, size = 0x4000, scoped, tag = 'input window, operand 1, single buffered']
    #allocation6 [shape = 's32[1]{0}', space=sflag, size = 0x4, scoped, tag = 'scoped memory for tpu_custom_call.1']
    #allocation7 [shape = 'u8[4096]{0}', space=vmem, size = 0x1000, scoped, tag = 'output window, operand 0, single buffered']
    #allocation8 [shape = 'u8[4096]{0}', space=vmem, size = 0x1000, scoped, tag = 'output window, operand 1, single buffered']
    #allocation9 [shape = 's32[1]{0}', space=sflag, size = 0x4, scoped, tag = 'scoped memory for tpu_custom_call.1']
    #allocation10 [shape = 'u8[4096]{0}', space=vmem, size = 0x1000, scoped, tag = 'output window, operand 2, single buffered']
    %11 = vsyncpa [#allocation3], 0
    %12 = vsyncpa [#allocation6], 0
    %13 = vsyncpa [#allocation4], 0
    %14 = vsyncpa [#allocation9], 0
    // Predicated region
    $region2: #{tpu_custom_call.1} parent=1 // pred_check
      _
    $region3: #{tpu_custom_call.1} parent=1 // pred_check_branch
      %16 = sbr.rel (0) target = $region5
    $region4: #{tpu_custom_call.1} parent=1 // pred_region
      %s18 = ssub.s32 128, 128
      %19 = vsyncadd [#allocation3], %s18
      %s21 = sshll.u32 [#allocation2], 4
      %s22 = int_to_ptr.vmem [resolvable:$true] %s21
      %24 = dma.hbm_to_vmem [thread:$0]  %s0, 128, %s22, [#allocation3]
    $region5: #{tpu_custom_call.1} parent=1 // pred_fallthru
      _
    // Predicated region
    $region6: #{tpu_custom_call.1} parent=1 // pred_check
      _
    $region7: #{tpu_custom_call.1} parent=1 // pred_check_branch
      %26 = sbr.rel (0) target = $region9
    $region8: #{tpu_custom_call.1} parent=1 // pred_region
      %s28 = ssub.s32 512, 512
      %29 = vsyncadd [#allocation6], %s28
      %s30 = sshll.u32 [#allocation5], 4
      %s31 = int_to_ptr.vmem [resolvable:$true] %s30
      %36 = dma.hbm_to_vmem [thread:$0]  %s1, 512, %s31, [#allocation6], 128, 128, 8
    $region9: #{tpu_custom_call.1} parent=1 // pred_fallthru
      _
    // Predicated region
    $region10: #{tpu_custom_call.1} parent=1 // pred_check
      _
    $region11: #{tpu_custom_call.1} parent=1 // pred_check_branch
      %38 = sbr.rel (0) target = $region13
    $region12: #{tpu_custom_call.1} parent=1 // pred_region
      _
    $region13: #{tpu_custom_call.1} parent=1 // pred_fallthru
      _
    // Predicated region
    $region14: #{tpu_custom_call.1} parent=1 // pred_check
      _
    $region15: #{tpu_custom_call.1} parent=1 // pred_check_branch
      %40 = sbr.rel (0) target = $region17
    $region16: #{tpu_custom_call.1} parent=1 // pred_region
      %41 = dma.done [#allocation3], 128
    $region17: #{tpu_custom_call.1} parent=1 // pred_fallthru
      _
    // Predicated region
    $region18: #{tpu_custom_call.1} parent=1 // pred_check
      _
    $region19: #{tpu_custom_call.1} parent=1 // pred_check_branch
      %43 = sbr.rel (0) target = $region21
    $region20: #{tpu_custom_call.1} parent=1 // pred_region
      %44 = dma.done [#allocation6], 512
    $region21: #{tpu_custom_call.1} parent=1 // pred_fallthru
      _
    %v45 = vld [vmem:[#allocation2] sm:$0xff]
    %v46 = vld [vmem:[#allocation5] sm:$0xff]
    %v47 = vld [vmem:[#allocation5 + $0x8] sm:$0xff]
    %v48 = vld [vmem:[#allocation5 + $0x10] sm:$0xff]
    %v49 = vld [vmem:[#allocation5 + $0x18] sm:$0xff]
    %v50 = vld [vmem:[%s2] sm:$0x1]
    %v52 = vlaneseq
    %v53 = vshrl.u32 %v52, 7
    %v54 = vsub.s32 0, %v53
    %v55 = vrot.slane %v50, %v54
    %vm57 = vcmask 261120
    %v59 = vsel %vm57, %v45, 0
    %61 = vmatprep.subr.mxu0 0.0
    %62 = vmatpush1.msra.mxu0 0.0
    %63 = vmatprep.subr.mxu0 0.0
    %64 = vmatpush1.msra.mxu0 0.0
    %65 = vmatprep.subr.mxu0 0.0
    %66 = vmatpush1.msra.mxu0 0.0
    %67 = vmatprep.subr.mxu0 0.0
    %68 = vmatpush1.msra.mxu0 0.0
    %69 = vmatprep.subr.mxu0 0.0
    %70 = vmatpush1.msra.mxu0 0.0
    %71 = vmatprep.subr.mxu0 0.0
    %72 = vmatpush1.msra.mxu0 0.0
    %73 = vmatprep.subr.mxu0 0.0
    %74 = vmatpush1.msra.mxu0 0.0
    %75 = vmatprep.subr.mxu0 0.0
    %76 = vmatpush1.msra.mxu0 0.0
    %77 = vmatprep.subr.mxu0 0.0
    %78 = vmatpush1.msra.mxu0 0.0
    %79 = vmatprep.subr.mxu0 0.0
    %80 = vmatpush1.msra.mxu0 0.0
    %81 = vmatprep.subr.mxu0 0.0
    %82 = vmatpush1.msra.mxu0 0.0
    %83 = vmatprep.subr.mxu0 0.0
    %84 = vmatpush1.msra.mxu0 0.0
    %85 = vmatprep.subr.mxu0 0.0
    %86 = vmatpush1.msra.mxu0 %v49
    %87 = vmatprep.subr.mxu0 0.0
    %88 = vmatpush1.msra.mxu0 %v48
    %89 = vmatprep.subr.mxu0 0.0
    %90 = vmatpush1.msra.mxu0 %v47
    %91 = vmatprep.subr.mxu0 0.0
    %92 = vmatpush1.msra.mxu0 %v46
    %93 = vmatprep.subr.mxu0 0.0
    %94 = vmatpush2.msra.mxu0 0.0
    %95 = vmatprep.subr.mxu0 0.0
    %96 = vmatpush2.msra.mxu0 0.0
    %97 = vmatprep.subr.mxu0 0.0
    %98 = vmatpush2.msra.mxu0 0.0
    %99 = vmatprep.subr.mxu0 0.0
    %100 = vmatpush2.msra.mxu0 0.0
    %101 = vmatprep.subr.mxu0 0.0
    %102 = vmatpush2.msra.mxu0 0.0
    %103 = vmatprep.subr.mxu0 0.0
    %104 = vmatpush2.msra.mxu0 0.0
    %105 = vmatprep.subr.mxu0 0.0
    %106 = vmatpush2.msra.mxu0 0.0
    %107 = vmatprep.subr.mxu0 0.0
    %108 = vmatpush2.msra.mxu0 0.0
    %109 = vmatprep.subr.mxu0 0.0
    %110 = vmatpush2.msra.mxu0 0.0
    %111 = vmatprep.subr.mxu0 0.0
    %112 = vmatpush2.msra.mxu0 0.0
    %113 = vmatprep.subr.mxu0 0.0
    %114 = vmatpush2.msra.mxu0 0.0
    %115 = vmatprep.subr.mxu0 0.0
    %116 = vmatpush2.msra.mxu0 0.0
    %117 = vmatprep.subr.mxu0 0.0
    %118 = vmatpush2.msra.mxu0 0.0
    %119 = vmatprep.subr.mxu0 0.0
    %120 = vmatpush2.msra.mxu0 0.0
    %121 = vmatprep.subr.mxu0 0.0
    %122 = vmatpush2.msra.mxu0 0.0
    %123 = vmatprep.subr.mxu0 0.0
    %124 = vmatpush2.msra.mxu0 0.0
    %125 = vmatprep.mubr.f32.mxu0 0.0
    %126 = vmatmul.mubr.f32.gmra.mxu0 %v59
    %v127 = vpop.f32.mrf.mxu0
    %v128 = vadd.f32 %v55, %v127
    %v129 = vpop.f32.mrf.mxu0
    %130 = vdwg.mxu0
    %131 = vmax.xlane.f32.xlu0 %v128
    %v132 = vpop.xlane.xlu0 %131
    %v133 = vsub.f32 %v128, %v132
    %v134 = vmul.f32 %v133, 1.442695
    %v135 = vpow.pop %v134
    %136 = vadd.xlane.f32.xlu0 %v135
    %v137 = vpop.xlane.xlu0 %136
    %v138 = vlog2.pop %v137
    %v139 = vmul.f32 %v138, 0.6931472
    %v140 = vsub.f32 %v133, %v139
    %141 = vst [vmem:[#allocation7] sm:$0xff] %v128
    %142 = vst [vmem:[#allocation8] sm:$0xff] %v140
    %v143 = vmul.f32 %v140, 1.442695
    %v144 = vpow.pop %v143
    %145 = vst [vmem:[#allocation10] sm:$0xff] %v144
    // Predicated region
    $region22: #{tpu_custom_call.1} parent=1 // pred_check
      _
    $region23: #{tpu_custom_call.1} parent=1 // pred_check_branch
      %147 = sbr.rel (0) target = $region25
    $region24: #{tpu_custom_call.1} parent=1 // pred_region
      %s149 = ssub.s32 128, 128
      %150 = vsyncadd [#allocation4], %s149
      %s152 = sshll.u32 [#allocation7], 4
      %s153 = int_to_ptr.vmem [resolvable:$true] %s152
      %155 = dma.vmem_to_hbm [thread:$0]  %s153, 128, %s3, [#allocation4]
    $region25: #{tpu_custom_call.1} parent=1 // pred_fallthru
      _
    // Predicated region
    $region26: #{tpu_custom_call.1} parent=1 // pred_check
      _
    $region27: #{tpu_custom_call.1} parent=1 // pred_check_branch
      %157 = sbr.rel (0) target = $region29
    $region28: #{tpu_custom_call.1} parent=1 // pred_region
      %s159 = ssub.s32 128, 128
      %160 = vsyncadd [#allocation9], %s159
      %s162 = sshll.u32 [#allocation8], 4
      %s163 = int_to_ptr.vmem [resolvable:$true] %s162
      %165 = dma.vmem_to_hbm [thread:$0]  %s163, 128, %s4, [#allocation9]
    $region29: #{tpu_custom_call.1} parent=1 // pred_fallthru
      _
    // Predicated region
    $region30: #{tpu_custom_call.1} parent=1 // pred_check
      _
    $region31: #{tpu_custom_call.1} parent=1 // pred_check_branch
      %167 = sbr.rel (0) target = $region33
    $region32: #{tpu_custom_call.1} parent=1 // pred_region
      %s169 = ssub.s32 128, 128
      %170 = vsyncadd [#allocation9], %s169
      %s172 = sshll.u32 [#allocation10], 4
      %s173 = int_to_ptr.vmem [resolvable:$true] %s172
      %175 = dma.vmem_to_hbm [thread:$0]  %s173, 128, %s5, [#allocation9]
    $region33: #{tpu_custom_call.1} parent=1 // pred_fallthru
      _
    // Predicated region
    $region34: #{tpu_custom_call.1} parent=1 // pred_check
      _
    $region35: #{tpu_custom_call.1} parent=1 // pred_check_branch
      %177 = sbr.rel (0) target = $region37
    $region36: #{tpu_custom_call.1} parent=1 // pred_region
      %178 = dma.done [#allocation4], 128
    $region37: #{tpu_custom_call.1} parent=1 // pred_fallthru
      _
    // Predicated region
    $region38: #{tpu_custom_call.1} parent=1 // pred_check
      _
    $region39: #{tpu_custom_call.1} parent=1 // pred_check_branch
      %180 = sbr.rel (0) target = $region41
    $region40: #{tpu_custom_call.1} parent=1 // pred_region
      %181 = dma.done [#allocation9], 128
    $region41: #{tpu_custom_call.1} parent=1 // pred_fallthru
      _
    // Predicated region
    $region42: #{tpu_custom_call.1} parent=1 // pred_check
      _
    $region43: #{tpu_custom_call.1} parent=1 // pred_check_branch
      %183 = sbr.rel (0) target = $region45
    $region44: #{tpu_custom_call.1} parent=1 // pred_region
      %184 = dma.done [#allocation9], 128
    $region45: #{tpu_custom_call.1} parent=1 // pred_fallthru
      _
    %185 = vsyncpa [#allocation3], 1
    %186 = vsyncpa [#allocation6], 1
    %187 = vsyncpa [#allocation4], 1
    %188 = vsyncpa [#allocation9], 1

</llo_original>
